<compile_context>
chip_gen: v5e
topology: v5e:2x2
jax: 0.10.0
libtpu: 0.0.40
codegen_flags: <defaults>
</compile_context>

<pallas_src>
import jax
import jax.numpy as jnp
from jax.experimental import pallas as pl
from jax.experimental.pallas import tpu as pltpu

_LANE = 128
_SUBLANE = 8


def _round_up(n, m):
    return ((n + m - 1) // m) * m


def _pad2d(a, rows, cols):
    return jnp.pad(a, ((0, rows - a.shape[0]), (0, cols - a.shape[1])))


# ---------------------------------------------------------------------------
# One-time hardware / capability probes (cached at module level, NOT per call).
# ---------------------------------------------------------------------------
_VMEM_CAPACITY = None
_BUFFERED_SINGLE_OK = None
_FORWARD_CACHE = {}


def _vmem_capacity_bytes():
    global _VMEM_CAPACITY
    if _VMEM_CAPACITY is None:
        try:
            _VMEM_CAPACITY = int(pltpu.get_tpu_info().vmem_capacity_bytes)
        except Exception:
            _VMEM_CAPACITY = 64 << 20  # conservative default (v7x per-TC VMEM)
    return _VMEM_CAPACITY


def _buffered_single_supported():
    """Probe once whether pipeline_mode=pl.Buffered(1) lowers on this jax/Mosaic.

    Uses a tiny standalone kernel so a failing probe can never hide a real bug
    in the MLP kernel (which is built without any try/except).
    """
    global _BUFFERED_SINGLE_OK
    if _BUFFERED_SINGLE_OK is not None:
        return _BUFFERED_SINGLE_OK

    def _probe_kernel(w_ref, o_ref):
        o_ref[...] = w_ref[...] + 1.0

    try:
        w = jnp.zeros((_SUBLANE, _LANE), jnp.float32)
        out = pl.pallas_call(
            _probe_kernel,
            out_shape=jax.ShapeDtypeStruct((2 * _SUBLANE, _LANE), jnp.float32),
            grid=(2,),
            in_specs=[
                pl.BlockSpec(
                    (_SUBLANE, _LANE), lambda i: (0, 0), pipeline_mode=pl.Buffered(1)
                )
            ],
            out_specs=pl.BlockSpec((_SUBLANE, _LANE), lambda i: (i, 0)),
        )(w)
        jax.block_until_ready(out)
        _BUFFERED_SINGLE_OK = True
    except Exception:
        _BUFFERED_SINGLE_OK = False
    return _BUFFERED_SINGLE_OK


# ---------------------------------------------------------------------------
# Kernel body: 3 matmuls + biases + tanh fused.
# ---------------------------------------------------------------------------
def _mlp_kernel(x_ref, w1_ref, b1_ref, w2_ref, b2_ref, w3_ref, b3_ref, o_ref):
    cd = w1_ref.dtype  # MXU operand dtype (bf16 default, f32 optional)
    x = x_ref[...].astype(cd)
    h = jnp.tanh(
        jnp.dot(x, w1_ref[...], preferred_element_type=jnp.float32) + b1_ref[...]
    )
    h = jnp.tanh(
        jnp.dot(h.astype(cd), w2_ref[...], preferred_element_type=jnp.float32)
        + b2_ref[...]
    )
    y = (
        jnp.dot(h.astype(cd), w3_ref[...], preferred_element_type=jnp.float32)
        + b3_ref[...]
    )
    o_ref[...] = y.astype(o_ref.dtype)


# ---------------------------------------------------------------------------
# One-time parameter layout prep (do NOT call per forward pass).
# ---------------------------------------------------------------------------
def prepare_params(params, *, matmul_dtype=jnp.bfloat16, lane=_LANE):
    """Transpose PyTorch-style (out, in) weights to (in, out), reshape biases to
    (1, out) rows, and zero-pad the input / hidden / output feature axes to a
    multiple of `lane` (128) so every DMA, matmul and store in the kernel is
    lane-dense.  Zero padding is exact: padded hidden columns are tanh(0)=0 and
    the corresponding padded rows of the next weight are 0.
    """
    input_dim = params["w1"].shape[1]
    hidden_dim = params["w1"].shape[0]
    output_dim = params["w3"].shape[0]
    in_p = _round_up(input_dim, lane)
    hid_p = _round_up(hidden_dim, lane)
    out_p = _round_up(output_dim, lane)
    config = (
        input_dim,
        hidden_dim,
        output_dim,
        in_p,
        hid_p,
        out_p,
        jnp.dtype(matmul_dtype).name,
    )
    return {
        "w1": _pad2d(params["w1"].T.astype(matmul_dtype), in_p, hid_p),
        "w2": _pad2d(params["w2"].T.astype(matmul_dtype), hid_p, hid_p),
        "w3": _pad2d(params["w3"].T.astype(matmul_dtype), hid_p, out_p),
        "b1": _pad2d(params["b1"][None, :].astype(jnp.float32), 1, hid_p),
        "b2": _pad2d(params["b2"][None, :].astype(jnp.float32), 1, hid_p),
        "b3": _pad2d(params["b3"][None, :].astype(jnp.float32), 1, out_p),
        "config": config,
    }


def _select_block_batch(B, vmem_cap):
    if vmem_cap >= (96 << 20):
        # v5e / v6e: 128 MiB VMEM, single TensorCore -> big tiles amortize the
        # ~0.35 us per-grid-step overhead and hide the resident weight fetch.
        max_bb, min_steps = 512, 1
    else:
        # v7x-class: 64 MiB VMEM per TC, 2 TCs -> smaller tiles, and guarantee
        # >= 2 parallel grid steps for mid/large batches so both cores work.
        max_bb, min_steps = 256, 2
    bb = min(_round_up(B, _SUBLANE), max_bb)
    if min_steps > 1 and B >= 64:
        bb = min(bb, _round_up(pl.cdiv(B, min_steps), _SUBLANE))
    return bb


def _build_forward(B, x_dtype, config, single_buffer_weights):
    (input_dim, hidden_dim, output_dim, in_p, hid_p, out_p, mm_dtype_name) = config
    w_bytes = jnp.dtype(mm_dtype_name).itemsize

    vmem_cap = _vmem_capacity_bytes()
    vmem_cap_usable = (vmem_cap * 3) // 4  # leave headroom (esp. v7x's 64 MiB)

    block_batch = _select_block_batch(B, vmem_cap)
    padded_B = _round_up(B, block_batch)
    grid = (padded_B // block_batch,)

    if single_buffer_weights:
        w_kwargs = dict(pipeline_mode=pl.Buffered(1))
        n_w_bufs = 1
    else:
        w_kwargs = {}
        n_w_bufs = 2  # default double-buffering

    resident_w_bytes = n_w_bufs * (
        (in_p * hid_p + hid_p * hid_p + hid_p * out_p) * w_bytes
        + (2 * hid_p + out_p) * 4
    )
    if resident_w_bytes > vmem_cap_usable // 2:
        # TODO(synk): add a K/N-tiled weight path (reduction grid axis marked
        # "arbitrary" + f32 VMEM accumulator) for hidden dims too large to keep
        # all weights resident in VMEM.
        raise ValueError("hidden_dim too large for the all-resident-weights kernel")

    # VMEM budget: double-buffered x / out blocks (f32), resident weights and
    # biases, plus the two live f32 hidden-activation intermediates.
    vmem_est = (
        2 * block_batch * (in_p + out_p) * 4
        + resident_w_bytes
        + 2 * block_batch * hid_p * 4
    )
    vmem_limit = int(min(max(2 * vmem_est, 8 << 20), vmem_cap_usable))

    call = pl.pallas_call(
        _mlp_kernel,
        out_shape=jax.ShapeDtypeStruct((padded_B, out_p), x_dtype),
        grid_spec=pltpu.PrefetchScalarGridSpec(
            num_scalar_prefetch=0,
            grid=grid,
            in_specs=[
                # x tiled over the batch axis; weights / biases resident.
                pl.BlockSpec((block_batch, in_p), lambda i: (i, 0)),
                pl.BlockSpec((in_p, hid_p), lambda i: (0, 0), **w_kwargs),
                pl.BlockSpec((1, hid_p), lambda i: (0, 0), **w_kwargs),
                pl.BlockSpec((hid_p, hid_p), lambda i: (0, 0), **w_kwargs),
                pl.BlockSpec((1, hid_p), lambda i: (0, 0), **w_kwargs),
                pl.BlockSpec((hid_p, out_p), lambda i: (0, 0), **w_kwargs),
                pl.BlockSpec((1, out_p), lambda i: (0, 0), **w_kwargs),
            ],
            out_specs=pl.BlockSpec((block_batch, out_p), lambda i: (i, 0)),
        ),
        compiler_params=pltpu.CompilerParams(
            dimension_semantics=("parallel",),
            vmem_limit_bytes=vmem_limit,
        ),
    )

    @jax.jit
    def fwd(x, w1, b1, w2, b2, w3, b3):
        # Batch pad + feature (K) pad folded into a single pad, fused in the
        # same XLA program as the pallas_call and the final slice.
        x_p = jnp.pad(x, ((0, padded_B - B), (0, in_p - input_dim)))
        out_padded = call(x_p, w1, b1, w2, b2, w3, b3)
        return out_padded[:B, :output_dim]

    return fwd


def mlp_forward(x, prepared):
    """x: (B, input_dim) float32. `prepared`: output of prepare_params()."""
    B, input_dim = x.shape
    config = prepared["config"]
    assert input_dim == config[0], "input_dim mismatch"
    key = (B, x.dtype, config)
    fwd = _FORWARD_CACHE.get(key)
    if fwd is None:
        fwd = _build_forward(B, x.dtype, config, _buffered_single_supported())
        _FORWARD_CACHE[key] = fwd
    return fwd(
        x,
        prepared["w1"],
        prepared["b1"],
        prepared["w2"],
        prepared["b2"],
        prepared["w3"],
        prepared["b3"],
    )


# ---------------------------------------------------------------------------
# Reference / init / self-test.
# ---------------------------------------------------------------------------
def init_mlp_params(key, input_dim, hidden_dim, output_dim):
    """Deterministic PyTorch-Linear-style init: U(-1/sqrt(fan_in), 1/sqrt(fan_in))."""
    ks = jax.random.split(key, 6)

    def lin(kw, kb, fan_in, fan_out):
        bound = 1.0 / jnp.sqrt(fan_in)
        w = jax.random.uniform(kw, (fan_out, fan_in), jnp.float32, -bound, bound)
        b = jax.random.uniform(kb, (fan_out,), jnp.float32, -bound, bound)
        return w, b

    w1, b1 = lin(ks[0], ks[1], input_dim, hidden_dim)
    w2, b2 = lin(ks[2], ks[3], hidden_dim, hidden_dim)
    w3, b3 = lin(ks[4], ks[5], hidden_dim, output_dim)
    return {"w1": w1, "b1": b1, "w2": w2, "b2": b2, "w3": w3, "b3": b3}


def mlp_reference(x, p):
    h = jnp.tanh(x @ p["w1"].T + p["b1"])
    h = jnp.tanh(h @ p["w2"].T + p["b2"])
    return h @ p["w3"].T + p["b3"]


if __name__ == "__main__":
    key = jax.random.PRNGKey(0)
    k_params, k_x = jax.random.split(key)

    batch, input_dim, hidden_dim, output_dim = 16, 16, 32, 8
    params = init_mlp_params(k_params, input_dim, hidden_dim, output_dim)
    x = jax.random.normal(k_x, (batch, input_dim), jnp.float32)
    ref = mlp_reference(x, params)

    # Default path: bf16 MXU operands, f32 accumulation / bias / tanh.
    prepared_bf16 = prepare_params(params)  # one-time layout prep
    out = jax.block_until_ready(mlp_forward(x, prepared_bf16))
    assert out.shape == (batch, output_dim)
    assert jnp.allclose(out, ref, atol=2e-2, rtol=2e-2), "mismatch vs reference (bf16)"

    # Exact-parity path: f32 operands.
    prepared_f32 = prepare_params(params, matmul_dtype=jnp.float32)
    out_f32 = jax.block_until_ready(mlp_forward(x, prepared_f32))
    assert jnp.allclose(out_f32, ref, atol=1e-5, rtol=1e-5), "mismatch vs reference (f32)"

    # Non-multiple batch size exercises the zero-padded tail path.
    x_odd = jax.random.normal(jax.random.PRNGKey(1), (13, input_dim), jnp.float32)
    out_odd = jax.block_until_ready(mlp_forward(x_odd, prepared_bf16))
    ref_odd = mlp_reference(x_odd, params)
    assert out_odd.shape == (13, output_dim)
    assert jnp.allclose(out_odd, ref_odd, atol=2e-2, rtol=2e-2), "mismatch (odd batch)"

    print("KERNEL_OK")
</pallas_src>

<mosaic_0001>
module attributes {stable_mosaic.version = 11 : i64} {
  func.func @_probe_kernel(%arg0: i32, %arg1: memref<8x128xf32, #tpu.memory_space<vmem>>, %arg2: memref<8x128xf32, #tpu.memory_space<vmem>>) attributes {dimension_semantics = [#tpu.dimension_semantics<arbitrary>], iteration_bounds = array<i64: 2>, scalar_prefetch = 0 : i64, scratch_operands = 0 : i64, tpu.core_type = #tpu.core_type<tc>, window_params = [{pipeline_mode = #tpu.pipeline_mode<synchronous>, transform_indices = @transform_0, window_bounds = array<i64: 8, 128>}, {transform_indices = @transform_1, window_bounds = array<i64: 8, 128>}]} {
    %c0 = arith.constant 0 : index
    %c0_0 = arith.constant 0 : index
    %0 = vector.load %arg1[%c0, %c0_0] : memref<8x128xf32, #tpu.memory_space<vmem>>, vector<8x128xf32>
    %cst = arith.constant 1.000000e+00 : f32
    %1 = vector.broadcast %cst : f32 to vector<8x128xf32>
    %2 = arith.addf %0, %1 : vector<8x128xf32>
    %c0_1 = arith.constant 0 : index
    %c0_2 = arith.constant 0 : index
    %3 = vector.load %arg2[%c0_1, %c0_2] : memref<8x128xf32, #tpu.memory_space<vmem>>, vector<8x128xf32>
    tpu.vector_store %arg2[%c0_1, %c0_2], %2 {strides = array<i32>} : memref<8x128xf32, #tpu.memory_space<vmem>>, vector<8x128xf32>,
    return
  }
  func.func @transform_0(%arg0: i32) -> (i32, i32) {
    %c0_i32 = arith.constant 0 : i32
    %c0_i32_0 = arith.constant 0 : i32
    %c0_i32_1 = arith.constant 0 : i32
    return %c0_i32, %c0_i32_0 : i32, i32
  }
  func.func @transform_1(%arg0: i32) -> (i32, i32) {
    %c0_i32 = arith.constant 0 : i32
    %c0_i32_0 = arith.constant 0 : i32
    return %arg0, %c0_i32 : i32, i32
  }
}

module attributes {stable_mosaic.version = 11 : i64} {
  func.func @_mlp_kernel(%arg0: i32, %arg1: memref<16x128xf32, #tpu.memory_space<vmem>>, %arg2: memref<128x128xbf16, #tpu.memory_space<vmem>>, %arg3: memref<1x128xf32, #tpu.memory_space<vmem>>, %arg4: memref<128x128xbf16, #tpu.memory_space<vmem>>, %arg5: memref<1x128xf32, #tpu.memory_space<vmem>>, %arg6: memref<128x128xbf16, #tpu.memory_space<vmem>>, %arg7: memref<1x128xf32, #tpu.memory_space<vmem>>, %arg8: memref<16x128xf32, #tpu.memory_space<vmem>>) attributes {dimension_semantics = [#tpu.dimension_semantics<parallel>], iteration_bounds = array<i64: 1>, scalar_prefetch = 0 : i64, scratch_operands = 0 : i64, tpu.core_type = #tpu.core_type<tc>, window_params = [{transform_indices = @transform_0, window_bounds = array<i64: 16, 128>}, {pipeline_mode = #tpu.pipeline_mode<synchronous>, transform_indices = @transform_1, window_bounds = array<i64: 128, 128>}, {pipeline_mode = #tpu.pipeline_mode<synchronous>, transform_indices = @transform_2, window_bounds = array<i64: 1, 128>}, {pipeline_mode = #tpu.pipeline_mode<synchronous>, transform_indices = @transform_3, window_bounds = array<i64: 128, 128>}, {pipeline_mode = #tpu.pipeline_mode<synchronous>, transform_indices = @transform_4, window_bounds = array<i64: 1, 128>}, {pipeline_mode = #tpu.pipeline_mode<synchronous>, transform_indices = @transform_5, window_bounds = array<i64: 128, 128>}, {pipeline_mode = #tpu.pipeline_mode<synchronous>, transform_indices = @transform_6, window_bounds = array<i64: 1, 128>}, {transform_indices = @transform_7, window_bounds = array<i64: 16, 128>}]} {
    %c0 = arith.constant 0 : index
    %c0_0 = arith.constant 0 : index
    %0 = vector.load %arg1[%c0, %c0_0] : memref<16x128xf32, #tpu.memory_space<vmem>>, vector<16x128xf32>
    %1 = arith.truncf %0 : vector<16x128xf32> to vector<16x128xbf16>
    %c0_1 = arith.constant 0 : index
    %c0_2 = arith.constant 0 : index
    %2 = vector.load %arg2[%c0_1, %c0_2] : memref<128x128xbf16, #tpu.memory_space<vmem>>, vector<128x128xbf16>
    %cst = arith.constant dense<0.000000e+00> : vector<16x128xf32>
    %3 = tpu.matmul %1, %2, %cst {dimension_numbers = #tpu.dot_dimension_numbers<[1], [0], [0], [1], [0, 0, 1, 1], [], []>} : vector<16x128xbf16>, vector<128x128xbf16>, vector<16x128xf32> -> vector<16x128xf32>
    %c0_3 = arith.constant 0 : index
    %c0_4 = arith.constant 0 : index
    %4 = vector.load %arg3[%c0_3, %c0_4] : memref<1x128xf32, #tpu.memory_space<vmem>>, vector<1x128xf32>
    %5 = vector.broadcast %4 : vector<1x128xf32> to vector<16x128xf32>
    %6 = arith.addf %3, %5 : vector<16x128xf32>
    %7 = math.tanh %6 : vector<16x128xf32>
    %8 = arith.truncf %7 : vector<16x128xf32> to vector<16x128xbf16>
    %c0_5 = arith.constant 0 : index
    %c0_6 = arith.constant 0 : index
    %9 = vector.load %arg4[%c0_5, %c0_6] : memref<128x128xbf16, #tpu.memory_space<vmem>>, vector<128x128xbf16>
    %cst_7 = arith.constant dense<0.000000e+00> : vector<16x128xf32>
    %10 = tpu.matmul %8, %9, %cst_7 {dimension_numbers = #tpu.dot_dimension_numbers<[1], [0], [0], [1], [0, 0, 1, 1], [], []>} : vector<16x128xbf16>, vector<128x128xbf16>, vector<16x128xf32> -> vector<16x128xf32>
    %c0_8 = arith.constant 0 : index
    %c0_9 = arith.constant 0 : index
    %11 = vector.load %arg5[%c0_8, %c0_9] : memref<1x128xf32, #tpu.memory_space<vmem>>, vector<1x128xf32>
    %12 = vector.broadcast %11 : vector<1x128xf32> to vector<16x128xf32>
    %13 = arith.addf %10, %12 : vector<16x128xf32>
    %14 = math.tanh %13 : vector<16x128xf32>
    %15 = arith.truncf %14 : vector<16x128xf32> to vector<16x128xbf16>
    %c0_10 = arith.constant 0 : index
    %c0_11 = arith.constant 0 : index
    %16 = vector.load %arg6[%c0_10, %c0_11] : memref<128x128xbf16, #tpu.memory_space<vmem>>, vector<128x128xbf16>
    %cst_12 = arith.constant dense<0.000000e+00> : vector<16x128xf32>
    %17 = tpu.matmul %15, %16, %cst_12 {dimension_numbers = #tpu.dot_dimension_numbers<[1], [0], [0], [1], [0, 0, 1, 1], [], []>} : vector<16x128xbf16>, vector<128x128xbf16>, vector<16x128xf32> -> vector<16x128xf32>
    %c0_13 = arith.constant 0 : index
    %c0_14 = arith.constant 0 : index
    %18 = vector.load %arg7[%c0_13, %c0_14] : memref<1x128xf32, #tpu.memory_space<vmem>>, vector<1x128xf32>
    %19 = vector.broadcast %18 : vector<1x128xf32> to vector<16x128xf32>
    %20 = arith.addf %17, %19 : vector<16x128xf32>
    %c0_15 = arith.constant 0 : index
    %c0_16 = arith.constant 0 : index
    %21 = vector.load %arg8[%c0_15, %c0_16] : memref<16x128xf32, #tpu.memory_space<vmem>>, vector<16x128xf32>
    tpu.vector_store %arg8[%c0_15, %c0_16], %20 {strides = array<i32>} : memref<16x128xf32, #tpu.memory_space<vmem>>, vector<16x128xf32>,
    return
  }
  func.func @transform_0(%arg0: i32) -> (i32, i32) {
    %c0_i32 = arith.constant 0 : i32
    %c0_i32_0 = arith.constant 0 : i32
    return %arg0, %c0_i32 : i32, i32
  }
  func.func @transform_1(%arg0: i32) -> (i32, i32) {
    %c0_i32 = arith.constant 0 : i32
    %c0_i32_0 = arith.constant 0 : i32
    %c0_i32_1 = arith.constant 0 : i32
    return %c0_i32, %c0_i32_0 : i32, i32
  }
  func.func @transform_2(%arg0: i32) -> (i32, i32) {
    %c0_i32 = arith.constant 0 : i32
    %c0_i32_0 = arith.constant 0 : i32
    %c0_i32_1 = arith.constant 0 : i32
    return %c0_i32, %c0_i32_0 : i32, i32
  }
  func.func @transform_3(%arg0: i32) -> (i32, i32) {
    %c0_i32 = arith.constant 0 : i32
    %c0_i32_0 = arith.constant 0 : i32
    %c0_i32_1 = arith.constant 0 : i32
    return %c0_i32, %c0_i32_0 : i32, i32
  }
  func.func @transform_4(%arg0: i32) -> (i32, i32) {
    %c0_i32 = arith.constant 0 : i32
    %c0_i32_0 = arith.constant 0 : i32
    %c0_i32_1 = arith.constant 0 : i32
    return %c0_i32, %c0_i32_0 : i32, i32
  }
  func.func @transform_5(%arg0: i32) -> (i32, i32) {
    %c0_i32 = arith.constant 0 : i32
    %c0_i32_0 = arith.constant 0 : i32
    %c0_i32_1 = arith.constant 0 : i32
    return %c0_i32, %c0_i32_0 : i32, i32
  }
  func.func @transform_6(%arg0: i32) -> (i32, i32) {
    %c0_i32 = arith.constant 0 : i32
    %c0_i32_0 = arith.constant 0 : i32
    %c0_i32_1 = arith.constant 0 : i32
    return %c0_i32, %c0_i32_0 : i32, i32
  }
  func.func @transform_7(%arg0: i32) -> (i32, i32) {
    %c0_i32 = arith.constant 0 : i32
    %c0_i32_0 = arith.constant 0 : i32
    return %arg0, %c0_i32 : i32, i32
  }
}

</mosaic_0001>

<llo_original>
// kernel: tpu_custom_call.1
$region0: #{tpu_custom_call.1}
  #allocation0 [shape = 'u32[]', space=smem, size = 0x4, offset = 0x4, fixed_abs, tag = 'smem constant byte address 0x4 - core index']
  #allocation1 [shape = 'u32[72,128]{1,0:T(1,128)}', space=vmem, size = 0x9000, scoped, tag = 'internal scratch']
  %s0 = inlined_call_operand.hbm [shape: f32[8,128], index: 0, kind: input, shape index: {}]
  %s1 = inlined_call_operand.hbm [shape: f32[16,128], index: 1, kind: output, shape index: {}]
  %s2 = sld [smem:[#allocation0]]
  $region41: #{tpu_custom_call.1} parent=0
    _
  %s4 = ssub.s32 1, %s2
  %s5 = scalar_select 0, %s4, %s2
  $region1: #{tpu_custom_call.1} parent=0
    #allocation2 [shape = 'u8[4096]{0}', space=vmem, size = 0x1000, scoped, tag = 'input window, operand 0, single buffered']
    #allocation3 [shape = 's32[2]{0}', space=sflag, size = 0x8, scoped, tag = 'scoped memory for tpu_custom_call.1']
    #allocation4 [shape = 's32[2]{0}', space=sflag, size = 0x8, scoped, tag = 'scoped memory for tpu_custom_call.1']
    #allocation5 [shape = 'u8[8192]{0}', space=vmem, size = 0x2000, scoped, tag = 'output window, operand 0']
    %6 = vsyncpa [#allocation3], 0
    %7 = vsyncpa [#allocation4], 0
    %s8 = scalar_lea.sflag [#allocation4], 1
    %9 = vsyncpa %s8, 0
    loop: start=0, step=1, limit=4
    $region2: #{tpu_custom_call.1} parent=1 // loop_pre_header
      _
    $region3: #{tpu_custom_call.1} parent=1 // loop_header
      %s11 = sphi 0, %s15
      %p12 = scmp.ge.s32.totalorder %s11, 4
      %s19 = sphi 0, %s19
      %s21 = sphi 0, %s19
      %s22 = sphi 0, %s21
      %s36 = sphi 0, %s22
      %s42 = sphi 0, %s44
      %s45 = sphi 0, %s42
      %s46 = sphi 0, %s45
      %s62 = sphi 0, %s46
    $region4: #{tpu_custom_call.1} parent=1 // loop_header_branch
      %14 = sbr.rel (%p12) target = $region8
    $region5: #{tpu_custom_call.1} parent=1 // loop_body
      %s16 = ssub.s32 %s11, 1
      %s17 = ssub.s32 %s11, 2
      %s18 = sadd.s32 %s11, 1
      %s20 = sadd.s32 %s19, 1
      %p23 = scmp.eq.s32.totalorder %s11, 1
      %p24 = scmp.ne.s32.totalorder %s19, %s21
      %p25 = scmp.eq.s32.totalorder %s11, 0
      %p26 = por %p24, %p25
      %p27 = scmp.ne.s32.totalorder %s19, %s21
      %p28 = scmp.eq.s32.totalorder %s16, 1
      %p29 = por %p27, %p28
      %p30 = scmp.ne.s32.totalorder %s21, %s22
      %p31 = scmp.eq.s32.totalorder %s16, 0
      %p32 = por %p30, %p31
      %p33 = scmp.ne.s32.totalorder %s21, %s22
      %p34 = scmp.eq.s32.totalorder %s17, 1
      %p35 = por %p33, %p34
      %p37 = scmp.ne.s32.totalorder %s22, %s36
      %p38 = scmp.eq.s32.totalorder %s17, 0
      %p39 = por %p37, %p38
      %s40 = ssub.s32 %s11, %s18
      %p41 = scmp.eq.s32.totalorder %s40, 0
      %s43 = sadd.s32 %s42, 1
      %s44 = scalar_select %p41, %s42, %s43
      %p47 = pneg %p41
      %p48 = scmp.eq.s32.totalorder %s11, 1
      %p49 = por %p47, %p48
      %p50 = scmp.ne.s32.totalorder %s42, %s45
      %p51 = scmp.eq.s32.totalorder %s11, 0
      %p52 = por %p50, %p51
      %p53 = scmp.ne.s32.totalorder %s42, %s45
      %p54 = scmp.eq.s32.totalorder %s16, 1
      %p55 = por %p53, %p54
      %p56 = scmp.ne.s32.totalorder %s45, %s46
      %p57 = scmp.eq.s32.totalorder %s16, 0
      %p58 = por %p56, %p57
      %p59 = scmp.ne.s32.totalorder %s45, %s46
      %p60 = scmp.eq.s32.totalorder %s17, 1
      %p61 = por %p59, %p60
      %p63 = scmp.ne.s32.totalorder %s46, %s62
      %p64 = scmp.eq.s32.totalorder %s17, 0
      %p65 = por %p63, %p64
      %p66 = scmp.le.s32.totalorder 1, %s11
      %p67 = scmp.lt.s32.totalorder %s11, 3
      %p68 = pnand %p66, %p67
      %p69 = pneg %p68
      // Predicated region
      $region9: #{tpu_custom_call.1} parent=5 // pred_check
        _
      $region10: #{tpu_custom_call.1} parent=5 // pred_check_branch
        %71 = sbr.rel (%p68) target = $region12
      $region11: #{tpu_custom_call.1} parent=5 // pred_region
        %s72 = ssub.s32 %s11, 1
        // Predicated region
        $region13: #{tpu_custom_call.1} parent=11 // pred_check
          %p73 = pneg %p32
        $region14: #{tpu_custom_call.1} parent=11 // pred_check_branch
          %75 = sbr.rel (%p73) target = $region16
        $region15: #{tpu_custom_call.1} parent=11 // pred_region
          %77 = vsyncadd [#allocation3], 0
          %s79 = sshll.u32 %s0, 4
          %s80 = int_to_ptr.hbm [resolvable:$true] %s79
          %s81 = sshll.u32 [#allocation2], 4
          %s82 = int_to_ptr.vmem [resolvable:$true] %s81
          %84 = dma.hbm_to_vmem [thread:$0]  %s80, 128, %s82, [#allocation3]
        $region16: #{tpu_custom_call.1} parent=11 // pred_fallthru
          _
      $region12: #{tpu_custom_call.1} parent=5 // pred_fallthru
        _
      %p85 = scmp.lt.s32.totalorder %s11, 2
      // Predicated region
      $region17: #{tpu_custom_call.1} parent=5 // pred_check
        %p86 = pneg %p85
      $region18: #{tpu_custom_call.1} parent=5 // pred_check_branch
        %88 = sbr.rel (%p86) target = $region20
      $region19: #{tpu_custom_call.1} parent=5 // pred_region
        _
      $region20: #{tpu_custom_call.1} parent=5 // pred_fallthru
        _
      %p89 = scmp.le.s32.totalorder 1, %s11
      %p90 = scmp.lt.s32.totalorder %s11, 3
      %p91 = pnand %p89, %p90
      %p92 = pneg %p91
      // Predicated region
      $region21: #{tpu_custom_call.1} parent=5 // pred_check
        _
      $region22: #{tpu_custom_call.1} parent=5 // pred_check_branch
        %94 = sbr.rel (%p91) target = $region24
      $region23: #{tpu_custom_call.1} parent=5 // pred_region
        %s95 = ssub.s32 %s11, 1
        // Predicated region
        $region25: #{tpu_custom_call.1} parent=23 // pred_check
          %p96 = pneg %p32
        $region26: #{tpu_custom_call.1} parent=23 // pred_check_branch
          %98 = sbr.rel (%p96) target = $region28
        $region27: #{tpu_custom_call.1} parent=23 // pred_region
          %100 = dma.done [#allocation3], 128
        $region28: #{tpu_custom_call.1} parent=23 // pred_fallthru
          _
        %p101 = pneg %p32
        %p102 = pneg %p29
        %p103 = pneg %p58
        %p104 = pneg %p55
        %s105 = sand.u32 %s45, 1
        %s106 = scalar_lea.sflag [#allocation4], %s105
        %s107 = sand.u32 %s45, 1
        %s108 = smul.addr %s107, 8
        %s109 = scalar_lea.vmem [#allocation5], %s108
        %v110 = vld [vmem:[#allocation2] sm:$0xff]
        %v111 = vadd.f32 %v110, 1.0
        %112 = vst [vmem:[%s109] sm:$0xff] %v111
        %s113 = sand.u32 %s45, 1
        %s114 = scalar_lea.sflag [#allocation4], %s113
        %s115 = sand.u32 %s45, 1
        %s116 = smul.addr %s115, 8
        %s117 = scalar_lea.vmem [#allocation5], %s116
        // Predicated region
        $region29: #{tpu_custom_call.1} parent=23 // pred_check
          %p118 = pneg %p55
        $region30: #{tpu_custom_call.1} parent=23 // pred_check_branch
          %120 = sbr.rel (%p118) target = $region32
        $region31: #{tpu_custom_call.1} parent=23 // pred_region
          %122 = vsyncadd %s114, 0
          %s123 = smul.addr %s16, 8
          %s124 = scalar_lea.hbm %s1, %s123
          %s126 = sshll.u32 %s117, 4
          %s127 = int_to_ptr.vmem [resolvable:$true] %s126
          %s128 = sshll.u32 %s124, 4
          %s129 = int_to_ptr.hbm [resolvable:$true] %s128
          %131 = dma.vmem_to_hbm [thread:$0]  %s127, 128, %s129, %s114
        $region32: #{tpu_custom_call.1} parent=23 // pred_fallthru
          _
      $region24: #{tpu_custom_call.1} parent=5 // pred_fallthru
        _
      %p132 = scmp.le.s32.totalorder 2, %s11
      // Predicated region
      $region33: #{tpu_custom_call.1} parent=5 // pred_check
        %p133 = pneg %p132
      $region34: #{tpu_custom_call.1} parent=5 // pred_check_branch
        %135 = sbr.rel (%p133) target = $region36
      $region35: #{tpu_custom_call.1} parent=5 // pred_region
        %s136 = ssub.s32 %s11, 2
        // Predicated region
        $region37: #{tpu_custom_call.1} parent=35 // pred_check
          %p137 = pneg %p61
        $region38: #{tpu_custom_call.1} parent=35 // pred_check_branch
          %139 = sbr.rel (%p137) target = $region40
        $region39: #{tpu_custom_call.1} parent=35 // pred_region
          %s140 = sand.u32 %s46, 1
          %s141 = scalar_lea.sflag [#allocation4], %s140
          %s142 = sand.u32 %s46, 1
          %s143 = smul.addr %s142, 8
          %s144 = scalar_lea.vmem [#allocation5], %s143
          %146 = dma.done %s141, 128
        $region40: #{tpu_custom_call.1} parent=35 // pred_fallthru
          _
      $region36: #{tpu_custom_call.1} parent=5 // pred_fallthru
        _
    $region6: #{tpu_custom_call.1} parent=1 // loop_footer
      %s15 = sadd.s32 1, %s11
    $region7: #{tpu_custom_call.1} parent=1 // loop_footer_branch
      %10 = sbr.rel target = $region3
    $region8: #{tpu_custom_call.1} parent=1 // loop_exit
      _
    %147 = vsyncpa [#allocation3], 1
    %s148 = scalar_lea.sflag [#allocation3], 1
    %149 = vsyncpa %s148, 1
    %150 = vsyncpa [#allocation4], 1
    %s151 = scalar_lea.sflag [#allocation4], 1
    %152 = vsyncpa %s151, 1

// kernel: fwd.1
$region0: #{fwd.1}
  #allocation0 [shape = 'u32[]', space=smem, size = 0x4, offset = 0x4, fixed_abs, tag = 'smem constant byte address 0x4 - core index']
  #allocation1 [shape = 'u32[72,128]{1,0:T(1,128)}', space=vmem, size = 0x9000, scoped, tag = 'internal scratch']
  %s0 = inlined_call_operand.vmem [shape: f32[16,128], index: 0, kind: input, shape index: {}]
  %s1 = inlined_call_operand.hbm [shape: bf16[128,128], index: 1, kind: input, shape index: {}]
  %s2 = inlined_call_operand.vmem [shape: f32[1,128], index: 2, kind: input, shape index: {}]
  %s3 = inlined_call_operand.hbm [shape: bf16[128,128], index: 3, kind: input, shape index: {}]
  %s4 = inlined_call_operand.vmem [shape: f32[1,128], index: 4, kind: input, shape index: {}]
  %s5 = inlined_call_operand.hbm [shape: bf16[128,128], index: 5, kind: input, shape index: {}]
  %s6 = inlined_call_operand.vmem [shape: f32[1,128], index: 6, kind: input, shape index: {}]
  %s7 = inlined_call_operand.vmem [shape: f32[16,128], index: 7, kind: output, shape index: {}]
  %s8 = sld [smem:[#allocation0]]
  $region50: #{fwd.1} parent=0
    _
  %s10 = ssub.s32 1, %s8
  %s11 = scalar_select 0, %s10, %s8
  $region1: #{fwd.1} parent=0
    #allocation2 [shape = 'u8[32768]{0}', space=vmem, size = 0x8000, scoped, tag = 'input window, operand 1, single buffered']
    #allocation3 [shape = 's32[1]{0}', space=sflag, size = 0x4, scoped, tag = 'scoped memory for fwd.1']
    #allocation4 [shape = 'u8[32768]{0}', space=vmem, size = 0x8000, scoped, tag = 'input window, operand 3, single buffered']
    #allocation5 [shape = 's32[1]{0}', space=sflag, size = 0x4, scoped, tag = 'scoped memory for fwd.1']
    #allocation6 [shape = 'u8[32768]{0}', space=vmem, size = 0x8000, scoped, tag = 'input window, operand 5, single buffered']
    %12 = vsyncpa [#allocation3], 0
    %13 = vsyncpa [#allocation5], 0
    // Predicated region
    $region2: #{fwd.1} parent=1 // pred_check
      _
    $region3: #{fwd.1} parent=1 // pred_check_branch
      %15 = sbr.rel (0) target = $region5
    $region4: #{fwd.1} parent=1 // pred_region
      _
    $region5: #{fwd.1} parent=1 // pred_fallthru
      _
    // Predicated region
    $region6: #{fwd.1} parent=1 // pred_check
      _
    $region7: #{fwd.1} parent=1 // pred_check_branch
      %17 = sbr.rel (0) target = $region9
    $region8: #{fwd.1} parent=1 // pred_region
      %19 = vsyncadd [#allocation3], 0
      %s20 = sshll.u32 %s1, 4
      %s21 = int_to_ptr.hbm [resolvable:$true] %s20
      %s22 = sshll.u32 [#allocation2], 4
      %s23 = int_to_ptr.vmem [resolvable:$true] %s22
      %28 = dma.hbm_to_vmem [thread:$0]  %s21, 1024, %s23, [#allocation3], 64, 64, 4
    $region9: #{fwd.1} parent=1 // pred_fallthru
      _
    // Predicated region
    $region10: #{fwd.1} parent=1 // pred_check
      _
    $region11: #{fwd.1} parent=1 // pred_check_branch
      %30 = sbr.rel (0) target = $region13
    $region12: #{fwd.1} parent=1 // pred_region
      _
    $region13: #{fwd.1} parent=1 // pred_fallthru
      _
    // Predicated region
    $region14: #{fwd.1} parent=1 // pred_check
      _
    $region15: #{fwd.1} parent=1 // pred_check_branch
      %32 = sbr.rel (0) target = $region17
    $region16: #{fwd.1} parent=1 // pred_region
      %34 = vsyncadd [#allocation5], 0
      %s35 = sshll.u32 %s3, 4
      %s36 = int_to_ptr.hbm [resolvable:$true] %s35
      %s37 = sshll.u32 [#allocation4], 4
      %s38 = int_to_ptr.vmem [resolvable:$true] %s37
      %43 = dma.hbm_to_vmem [thread:$0]  %s36, 1024, %s38, [#allocation5], 64, 64, 4
    $region17: #{fwd.1} parent=1 // pred_fallthru
      _
    // Predicated region
    $region18: #{fwd.1} parent=1 // pred_check
      _
    $region19: #{fwd.1} parent=1 // pred_check_branch
      %45 = sbr.rel (0) target = $region21
    $region20: #{fwd.1} parent=1 // pred_region
      _
    $region21: #{fwd.1} parent=1 // pred_fallthru
      _
    // Predicated region
    $region22: #{fwd.1} parent=1 // pred_check
      _
    $region23: #{fwd.1} parent=1 // pred_check_branch
      %47 = sbr.rel (0) target = $region25
    $region24: #{fwd.1} parent=1 // pred_region
      %49 = vsyncadd [#allocation5], 0
      %s50 = sshll.u32 %s5, 4
      %s51 = int_to_ptr.hbm [resolvable:$true] %s50
      %s52 = sshll.u32 [#allocation6], 4
      %s53 = int_to_ptr.vmem [resolvable:$true] %s52
      %58 = dma.hbm_to_vmem [thread:$0]  %s51, 1024, %s53, [#allocation5], 64, 64, 4
    $region25: #{fwd.1} parent=1 // pred_fallthru
      _
    // Predicated region
    $region26: #{fwd.1} parent=1 // pred_check
      _
    $region27: #{fwd.1} parent=1 // pred_check_branch
      %60 = sbr.rel (0) target = $region29
    $region28: #{fwd.1} parent=1 // pred_region
      _
    $region29: #{fwd.1} parent=1 // pred_fallthru
      _
    // Predicated region
    $region30: #{fwd.1} parent=1 // pred_check
      _
    $region31: #{fwd.1} parent=1 // pred_check_branch
      %62 = sbr.rel (0) target = $region33
    $region32: #{fwd.1} parent=1 // pred_region
      %64 = dma.done [#allocation3], 1024
    $region33: #{fwd.1} parent=1 // pred_fallthru
      _
    // Predicated region
    $region34: #{fwd.1} parent=1 // pred_check
      _
    $region35: #{fwd.1} parent=1 // pred_check_branch
      %66 = sbr.rel (0) target = $region37
    $region36: #{fwd.1} parent=1 // pred_region
      %68 = dma.done [#allocation5], 1024
    $region37: #{fwd.1} parent=1 // pred_fallthru
      _
    // Predicated region
    $region38: #{fwd.1} parent=1 // pred_check
      _
    $region39: #{fwd.1} parent=1 // pred_check_branch
      %70 = sbr.rel (0) target = $region41
    $region40: #{fwd.1} parent=1 // pred_region
      %72 = dma.done [#allocation5], 1024
    $region41: #{fwd.1} parent=1 // pred_fallthru
      _
    %v73 = vld [vmem:[%s0] sm:$0xff]
    %v74 = vld [vmem:[%s0 + $0x8] sm:$0xff]
    %v75 = vpack.c.bf16 %v74, %v73
    %v76 = vld [vmem:[#allocation2] sm:$0xf]
    %v77 = vld [vmem:[#allocation2 + $0x4] sm:$0xf]
    %v78 = vld [vmem:[#allocation2 + $0x8] sm:$0xf]
    %v79 = vld [vmem:[#allocation2 + $0xc] sm:$0xf]
    %v80 = vld [vmem:[#allocation2 + $0x10] sm:$0xf]
    %v81 = vld [vmem:[#allocation2 + $0x14] sm:$0xf]
    %v82 = vld [vmem:[#allocation2 + $0x18] sm:$0xf]
    %v83 = vld [vmem:[#allocation2 + $0x1c] sm:$0xf]
    %v84 = vld [vmem:[#allocation2 + $0x20] sm:$0xf]
    %v85 = vld [vmem:[#allocation2 + $0x24] sm:$0xf]
    %v86 = vld [vmem:[#allocation2 + $0x28] sm:$0xf]
    %v87 = vld [vmem:[#allocation2 + $0x2c] sm:$0xf]
    %v88 = vld [vmem:[#allocation2 + $0x30] sm:$0xf]
    %v89 = vld [vmem:[#allocation2 + $0x34] sm:$0xf]
    %v90 = vld [vmem:[#allocation2 + $0x38] sm:$0xf]
    %v91 = vld [vmem:[#allocation2 + $0x3c] sm:$0xf]
    %v92 = vld [vmem:[%s2] sm:$0x1]
    %v94 = vperm.slane %v92, 0
    %v112 = vunpack.c.l.b16 %v76
    %v113 = vunpack.c.l.b16 %v77
    %v114 = vunpack.c.l.b16 %v78
    %v115 = vunpack.c.l.b16 %v79
    %v116 = vunpack.c.l.b16 %v80
    %v117 = vunpack.c.l.b16 %v81
    %v118 = vunpack.c.l.b16 %v82
    %v119 = vunpack.c.l.b16 %v83
    %v120 = vunpack.c.l.b16 %v84
    %v121 = vunpack.c.l.b16 %v85
    %v122 = vunpack.c.l.b16 %v86
    %v123 = vunpack.c.l.b16 %v87
    %v124 = vunpack.c.l.b16 %v88
    %v125 = vunpack.c.l.b16 %v89
    %v126 = vunpack.c.l.b16 %v90
    %v127 = vunpack.c.l.b16 %v91
    %v128 = vpack.c.b16 %v113, %v112
    %v129 = vpack.c.b16 %v115, %v114
    %v130 = vpack.c.b16 %v117, %v116
    %v131 = vpack.c.b16 %v119, %v118
    %v132 = vpack.c.b16 %v121, %v120
    %v133 = vpack.c.b16 %v123, %v122
    %v134 = vpack.c.b16 %v125, %v124
    %v135 = vpack.c.b16 %v127, %v126
    %144 = vmatpush.bf16.msra.mxu0 %v135
    %145 = vmatpush.bf16.msra.mxu0 %v134
    %146 = vmatpush.bf16.msra.mxu0 %v133
    %147 = vmatpush.bf16.msra.mxu0 %v132
    %148 = vmatpush.bf16.msra.mxu0 %v131
    %149 = vmatpush.bf16.msra.mxu0 %v130
    %150 = vmatpush.bf16.msra.mxu0 %v129
    %151 = vmatpush.bf16.msra.mxu0 %v128
    %152 = vmatmul.bf16.gmra.mxu0 %v75
    %v153 = vpop.f32.mrf.mxu0
    %v154 = vadd.f32 %v94, %v153
    %v155 = vpop.f32.mrf.mxu0
    %v156 = vadd.f32 %v94, %v155
    %157 = vdwg.mxu0
    %v158 = vtanh.pop %v154
    %v159 = vtanh.pop %v156
    %v160 = vpack.c.bf16 %v159, %v158
    %v161 = vld [vmem:[#allocation4] sm:$0xf]
    %v162 = vld [vmem:[#allocation4 + $0x4] sm:$0xf]
    %v163 = vld [vmem:[#allocation4 + $0x8] sm:$0xf]
    %v164 = vld [vmem:[#allocation4 + $0xc] sm:$0xf]
    %v165 = vld [vmem:[#allocation4 + $0x10] sm:$0xf]
    %v166 = vld [vmem:[#allocation4 + $0x14] sm:$0xf]
    %v167 = vld [vmem:[#allocation4 + $0x18] sm:$0xf]
    %v168 = vld [vmem:[#allocation4 + $0x1c] sm:$0xf]
    %v169 = vld [vmem:[#allocation4 + $0x20] sm:$0xf]
    %v170 = vld [vmem:[#allocation4 + $0x24] sm:$0xf]
    %v171 = vld [vmem:[#allocation4 + $0x28] sm:$0xf]
    %v172 = vld [vmem:[#allocation4 + $0x2c] sm:$0xf]
    %v173 = vld [vmem:[#allocation4 + $0x30] sm:$0xf]
    %v174 = vld [vmem:[#allocation4 + $0x34] sm:$0xf]
    %v175 = vld [vmem:[#allocation4 + $0x38] sm:$0xf]
    %v176 = vld [vmem:[#allocation4 + $0x3c] sm:$0xf]
    %v177 = vld [vmem:[%s4] sm:$0x1]
    %v179 = vperm.slane %v177, 0
    %v197 = vunpack.c.l.b16 %v161
    %v198 = vunpack.c.l.b16 %v162
    %v199 = vunpack.c.l.b16 %v163
    %v200 = vunpack.c.l.b16 %v164
    %v201 = vunpack.c.l.b16 %v165
    %v202 = vunpack.c.l.b16 %v166
    %v203 = vunpack.c.l.b16 %v167
    %v204 = vunpack.c.l.b16 %v168
    %v205 = vunpack.c.l.b16 %v169
    %v206 = vunpack.c.l.b16 %v170
    %v207 = vunpack.c.l.b16 %v171
    %v208 = vunpack.c.l.b16 %v172
    %v209 = vunpack.c.l.b16 %v173
    %v210 = vunpack.c.l.b16 %v174
    %v211 = vunpack.c.l.b16 %v175
    %v212 = vunpack.c.l.b16 %v176
    %v213 = vpack.c.b16 %v198, %v197
    %v214 = vpack.c.b16 %v200, %v199
    %v215 = vpack.c.b16 %v202, %v201
    %v216 = vpack.c.b16 %v204, %v203
    %v217 = vpack.c.b16 %v206, %v205
    %v218 = vpack.c.b16 %v208, %v207
    %v219 = vpack.c.b16 %v210, %v209
    %v220 = vpack.c.b16 %v212, %v211
    %229 = vmatpush.bf16.msra.mxu0 %v220
    %230 = vmatpush.bf16.msra.mxu0 %v219
    %231 = vmatpush.bf16.msra.mxu0 %v218
    %232 = vmatpush.bf16.msra.mxu0 %v217
    %233 = vmatpush.bf16.msra.mxu0 %v216
    %234 = vmatpush.bf16.msra.mxu0 %v215
    %235 = vmatpush.bf16.msra.mxu0 %v214
    %236 = vmatpush.bf16.msra.mxu0 %v213
    %237 = vmatmul.bf16.gmra.mxu0 %v160
    %v238 = vpop.f32.mrf.mxu0
    %v239 = vadd.f32 %v179, %v238
    %v240 = vpop.f32.mrf.mxu0
    %v241 = vadd.f32 %v179, %v240
    %242 = vdwg.mxu0
    %v243 = vtanh.pop %v239
    %v244 = vtanh.pop %v241
    %v245 = vpack.c.bf16 %v244, %v243
    %v246 = vld [vmem:[#allocation6] sm:$0xf]
    %v247 = vld [vmem:[#allocation6 + $0x4] sm:$0xf]
    %v248 = vld [vmem:[#allocation6 + $0x8] sm:$0xf]
    %v249 = vld [vmem:[#allocation6 + $0xc] sm:$0xf]
    %v250 = vld [vmem:[#allocation6 + $0x10] sm:$0xf]
    %v251 = vld [vmem:[#allocation6 + $0x14] sm:$0xf]
    %v252 = vld [vmem:[#allocation6 + $0x18] sm:$0xf]
    %v253 = vld [vmem:[#allocation6 + $0x1c] sm:$0xf]
    %v254 = vld [vmem:[#allocation6 + $0x20] sm:$0xf]
    %v255 = vld [vmem:[#allocation6 + $0x24] sm:$0xf]
    %v256 = vld [vmem:[#allocation6 + $0x28] sm:$0xf]
    %v257 = vld [vmem:[#allocation6 + $0x2c] sm:$0xf]
    %v258 = vld [vmem:[#allocation6 + $0x30] sm:$0xf]
    %v259 = vld [vmem:[#allocation6 + $0x34] sm:$0xf]
    %v260 = vld [vmem:[#allocation6 + $0x38] sm:$0xf]
    %v261 = vld [vmem:[#allocation6 + $0x3c] sm:$0xf]
    %v262 = vld [vmem:[%s6] sm:$0x1]
    %v264 = vperm.slane %v262, 0
    %v282 = vunpack.c.l.b16 %v246
    %v283 = vunpack.c.l.b16 %v247
    %v284 = vunpack.c.l.b16 %v248
    %v285 = vunpack.c.l.b16 %v249
    %v286 = vunpack.c.l.b16 %v250
    %v287 = vunpack.c.l.b16 %v251
    %v288 = vunpack.c.l.b16 %v252
    %v289 = vunpack.c.l.b16 %v253
    %v290 = vunpack.c.l.b16 %v254
    %v291 = vunpack.c.l.b16 %v255
    %v292 = vunpack.c.l.b16 %v256
    %v293 = vunpack.c.l.b16 %v257
    %v294 = vunpack.c.l.b16 %v258
    %v295 = vunpack.c.l.b16 %v259
    %v296 = vunpack.c.l.b16 %v260
    %v297 = vunpack.c.l.b16 %v261
    %v298 = vpack.c.b16 %v283, %v282
    %v299 = vpack.c.b16 %v285, %v284
    %v300 = vpack.c.b16 %v287, %v286
    %v301 = vpack.c.b16 %v289, %v288
    %v302 = vpack.c.b16 %v291, %v290
    %v303 = vpack.c.b16 %v293, %v292
    %v304 = vpack.c.b16 %v295, %v294
    %v305 = vpack.c.b16 %v297, %v296
    %314 = vmatpush.bf16.msra.mxu0 %v305
    %315 = vmatpush.bf16.msra.mxu0 %v304
    %316 = vmatpush.bf16.msra.mxu0 %v303
    %317 = vmatpush.bf16.msra.mxu0 %v302
    %318 = vmatpush.bf16.msra.mxu0 %v301
    %319 = vmatpush.bf16.msra.mxu0 %v300
    %320 = vmatpush.bf16.msra.mxu0 %v299
    %321 = vmatpush.bf16.msra.mxu0 %v298
    %322 = vmatmul.bf16.gmra.mxu0 %v245
    %v323 = vpop.f32.mrf.mxu0
    %v324 = vadd.f32 %v264, %v323
    %v325 = vpop.f32.mrf.mxu0
    %v326 = vadd.f32 %v264, %v325
    %327 = vdwg.mxu0
    %328 = vst [vmem:[%s7] sm:$0xff] %v324
    %329 = vst [vmem:[%s7 + $0x8] sm:$0xff] %v326
    // Predicated region
    $region42: #{fwd.1} parent=1 // pred_check
      _
    $region43: #{fwd.1} parent=1 // pred_check_branch
      %331 = sbr.rel (0) target = $region45
    $region44: #{fwd.1} parent=1 // pred_region
      _
    $region45: #{fwd.1} parent=1 // pred_fallthru
      _
    // Predicated region
    $region46: #{fwd.1} parent=1 // pred_check
      _
    $region47: #{fwd.1} parent=1 // pred_check_branch
      %333 = sbr.rel (0) target = $region49
    $region48: #{fwd.1} parent=1 // pred_region
      _
    $region49: #{fwd.1} parent=1 // pred_fallthru
      _
    %334 = vsyncpa [#allocation3], 1
    %335 = vsyncpa [#allocation5], 1

</llo_original>
